<compile_context>
chip_gen: v5e
topology: v5e:2x2
jax: 0.10.0
libtpu: 0.0.40
codegen_flags: <defaults>
</compile_context>

<pallas_src>
import numpy as np
import jax
import jax.numpy as jnp
from jax.experimental import pallas as pl
from jax.experimental.pallas import tpu as pltpu

# ----- small config, consistent with the Mfcc module signature -----
N_FFT = 256
HOP = 64
N_MELS = 64
N_MFCC = 32
SAMPLE_RATE = 16000
F_MIN = 40.0
F_MAX = 7600.0
NORM = "ortho"
PAD_END = True
CENTER = True

CHUNKS_PER_FRAME = N_FFT // HOP          # 4 hop-chunks per frame
N_FREQ = N_FFT // 2                      # 128: Nyquist bin dropped (zero mel weight)
N_MFCC_PAD = 128                         # lane-dense output width (zero-padded DCT)
MAX_TILE_T = 1024                        # frames per grid step (rows of the matmuls)
OVERLAP_CHUNKS = 8                       # 8-aligned cover of the 3-chunk frame overlap
DFT_DTYPE = jnp.bfloat16                 # MXU dtype for the DFT matmul (f32 accum);
                                         # set to jnp.float32 for bit-closer parity.

assert N_FFT % HOP == 0
assert F_MIN > 0.0 and F_MAX < SAMPLE_RATE / 2  # makes dropping the Nyquist bin exact


def _round_up(x, m):
    return ((x + m - 1) // m) * m


# ------------------- deterministic parameter construction -------------------
def _hz_to_mel(f):
    return 2595.0 * np.log10(1.0 + f / 700.0)


def _mel_to_hz(m):
    return 700.0 * (10.0 ** (m / 2595.0) - 1.0)


def melscale_fbanks(n_freqs, f_min, f_max, n_mels, sample_rate):
    # torchaudio.functional.melscale_fbanks, mel_scale="htk", norm=None
    all_freqs = np.linspace(0.0, sample_rate // 2, n_freqs)
    m_pts = np.linspace(_hz_to_mel(f_min), _hz_to_mel(f_max), n_mels + 2)
    f_pts = _mel_to_hz(m_pts)
    f_diff = f_pts[1:] - f_pts[:-1]                    # (n_mels+1,)
    slopes = f_pts[None, :] - all_freqs[:, None]       # (n_freqs, n_mels+2)
    down = -slopes[:, :-2] / f_diff[:-1]
    up = slopes[:, 2:] / f_diff[1:]
    fb = np.maximum(0.0, np.minimum(down, up))
    return fb.astype(np.float32)                       # (n_freqs, n_mels)


def create_dct(n_mfcc, n_mels, norm):
    # torchaudio.functional.create_dct
    n = np.arange(n_mels, dtype=np.float64)
    k = np.arange(n_mfcc, dtype=np.float64)[:, None]
    dct = np.cos(np.pi / n_mels * (n + 0.5) * k)       # (n_mfcc, n_mels)
    if norm == "ortho":
        dct[0] *= 1.0 / np.sqrt(2.0)
        dct *= np.sqrt(2.0 / n_mels)
    else:
        dct *= 2.0
    return dct.T.astype(np.float32)                    # (n_mels, n_mfcc)


def rdft_mats(n_fft):
    # real-input DFT as two dense matrices (sign of imag irrelevant for power)
    n_freq = n_fft // 2 + 1
    n = np.arange(n_fft, dtype=np.float64)[:, None]
    k = np.arange(n_freq, dtype=np.float64)[None, :]
    ang = 2.0 * np.pi * n * k / n_fft
    return np.cos(ang).astype(np.float32), (-np.sin(ang)).astype(np.float32)


# ------------------------------ Pallas kernel -------------------------------
def _make_mfcc_kernel(tile_t, n_freq, chunks_per_frame, dft_dtype):
    def kernel(main_ref, tail_ref, cossin_ref, mel_ref, dct_ref, out_ref):
        # main_ref:   (tile_t, HOP)          hop-chunks t0 .. t0+tile_t-1
        # tail_ref:   (OVERLAP_CHUNKS, HOP)  the next 8 chunks (frame overlap)
        # cossin_ref: (N_FFT, 2*n_freq)      bf16 fused cos|sin DFT matrix
        # mel_ref:    (n_freq, N_MELS)       f32 mel filterbank
        # dct_ref:    (N_MELS, N_MFCC_PAD)   f32 DCT, zero-padded to 128 lanes
        # out_ref:    (tile_t, N_MFCC_PAD)   f32 MFCC block (lane-dense)

        # Frame t (relative to this tile) = chunks[t : t+4] flattened. Build all
        # tile_t frames as a lane-concat of four statically shifted views of the
        # contiguous (tile_t+8, HOP) chunk slab — no frame matrix ever hits HBM.
        slab = jnp.concatenate([main_ref[...], tail_ref[...]], axis=0)
        frames = jnp.concatenate(
            [slab[j:j + tile_t, :] for j in range(chunks_per_frame)],
            axis=-1).astype(dft_dtype)                                # (tile_t, N_FFT)

        # rDFT via one fused matmul; re/im split is a free lane split at 128.
        re_im = jnp.dot(frames, cossin_ref[...],
                        preferred_element_type=jnp.float32)           # (tile_t, 2*n_freq)
        re = re_im[:, :n_freq]
        im = re_im[:, n_freq:]
        power = re * re + im * im                                     # power spectrum

        mel = jnp.dot(power, mel_ref[...],
                      preferred_element_type=jnp.float32)             # (tile_t, N_MELS)
        logmel = jnp.log(mel + 1e-6)                                  # log-mel
        out_ref[...] = jnp.dot(logmel, dct_ref[...],
                               preferred_element_type=jnp.float32)    # MFCC (padded)
    return kernel


# -------------------------------- wrapper ------------------------------------
def mfcc(audio):
    audio = audio.astype(jnp.float32)
    B, L = audio.shape

    # ---- pad_end: zero pad so (L - n_fft) % hop == 0 ----
    if PAD_END:
        rem = (L - N_FFT) % HOP
        pad = 0 if rem == 0 else HOP - rem
        if pad:
            audio = jnp.pad(audio, ((0, 0), (0, pad)))
        L += pad

    # ---- center reflect pad (torch.stft center=True, pad_mode='reflect') ----
    if CENTER:
        audio = jnp.pad(audio, ((0, 0), (N_FFT // 2, N_FFT // 2)), mode="reflect")
    L_pad = audio.shape[1]
    n_frames = 1 + (L_pad - N_FFT) // HOP

    # ---- frame tiling: pad frame count so every tile is full & 8-aligned ----
    tile_t = min(MAX_TILE_T, _round_up(n_frames, 8))
    t_pad = _round_up(n_frames, tile_t)
    n_tiles = t_pad // tile_t
    # +8 chunks so the overlap "tail" block of the last tile is in-bounds.
    n_chunks = t_pad + OVERLAP_CHUNKS
    extra = n_chunks * HOP - L_pad
    if extra:
        audio = jnp.pad(audio, ((0, 0), (0, extra)))
    chunks = audio.reshape(B, n_chunks, HOP)

    # ---- constant weights (trace-time numpy) ----
    cos_m, sin_m = rdft_mats(N_FFT)                                    # (256, 129)
    # Nyquist bin has zero mel weight (f_max < sr/2): drop it -> exactly 128 freqs.
    cossin = np.concatenate([cos_m[:, :N_FREQ], sin_m[:, :N_FREQ]], axis=1)  # (256,256)
    mel_fb = melscale_fbanks(N_FFT // 2 + 1, F_MIN, F_MAX,
                             N_MELS, SAMPLE_RATE)[:N_FREQ]             # (128, 64)
    dct_m = create_dct(N_MFCC, N_MELS, NORM)                           # (64, 32)
    dct_pad = np.zeros((N_MELS, N_MFCC_PAD), np.float32)               # lane-dense out
    dct_pad[:, :N_MFCC] = dct_m

    grid = (B, n_tiles)
    flops_per_frame = (2 * N_FFT * 2 * N_FREQ + 3 * N_FREQ
                       + 2 * N_FREQ * N_MELS + N_MELS + 2 * N_MELS * N_MFCC_PAD)
    cost = pl.CostEstimate(
        flops=B * t_pad * flops_per_frame,
        transcendentals=B * t_pad * N_MELS,
        bytes_accessed=(B * n_tiles * (tile_t + OVERLAP_CHUNKS) * HOP * 4
                        + N_FFT * 2 * N_FREQ * 2
                        + N_FREQ * N_MELS * 4 + N_MELS * N_MFCC_PAD * 4
                        + B * t_pad * N_MFCC_PAD * 4),
    )

    blocks_per_tile = tile_t // OVERLAP_CHUNKS   # tile_t is a multiple of 8
    kernel = _make_mfcc_kernel(tile_t, N_FREQ, CHUNKS_PER_FRAME, DFT_DTYPE)
    out = pl.pallas_call(
        kernel,
        out_shape=jax.ShapeDtypeStruct((B, t_pad, N_MFCC_PAD), jnp.float32),
        grid=grid,
        in_specs=[
            # Main chunk block of this frame tile: pipelined per grid step.
            pl.BlockSpec((None, tile_t, HOP), lambda b, t: (b, t, 0)),
            # 8-chunk overlap tail (same array, next block of 8 rows).
            pl.BlockSpec((None, OVERLAP_CHUNKS, HOP),
                         lambda b, t, _m=blocks_per_tile: (b, (t + 1) * _m, 0)),
            # Weights: constant index_maps -> fetched once, VMEM-resident.
            pl.BlockSpec((N_FFT, 2 * N_FREQ), lambda b, t: (0, 0)),
            pl.BlockSpec((N_FREQ, N_MELS), lambda b, t: (0, 0)),
            pl.BlockSpec((N_MELS, N_MFCC_PAD), lambda b, t: (0, 0)),
        ],
        out_specs=pl.BlockSpec((None, tile_t, N_MFCC_PAD), lambda b, t: (b, t, 0)),
        compiler_params=pltpu.CompilerParams(
            dimension_semantics=("parallel", "parallel")),
        cost_estimate=cost,
    )(chunks, chunks,
      jnp.asarray(cossin).astype(DFT_DTYPE),
      jnp.asarray(mel_fb),
      jnp.asarray(dct_pad))

    # (B, t_pad, 128) -> drop row/lane padding -> (B, n_mfcc, T)
    return out[:, :n_frames, :N_MFCC].transpose(0, 2, 1)


if __name__ == "__main__":
    key = jax.random.PRNGKey(0)
    audio = jax.random.normal(key, (2, 1024), dtype=jnp.float32)  # (batch, samples)
    result = jax.jit(mfcc)(audio)
    jax.block_until_ready(result)
    assert result.shape == (2, N_MFCC, 1 + 1024 // HOP), result.shape
    print("KERNEL_OK")
</pallas_src>

<mosaic_0001>
module attributes {stable_mosaic.version = 11 : i64} {
  func.func @kernel(%arg0: i32, %arg1: i32, %arg2: memref<1x24x64xf32, #tpu.memory_space<vmem>>, %arg3: memref<1x8x64xf32, #tpu.memory_space<vmem>>, %arg4: memref<256x256xbf16, #tpu.memory_space<vmem>>, %arg5: memref<128x64xf32, #tpu.memory_space<vmem>>, %arg6: memref<64x128xf32, #tpu.memory_space<vmem>>, %arg7: memref<1x24x128xf32, #tpu.memory_space<vmem>>) attributes {dimension_semantics = [#tpu.dimension_semantics<parallel>, #tpu.dimension_semantics<parallel>], iteration_bounds = array<i64: 2, 1>, scalar_prefetch = 0 : i64, scratch_operands = 0 : i64, tpu.core_type = #tpu.core_type<tc>, window_params = [{transform_indices = @transform_0, window_bounds = array<i64: 1, 24, 64>}, {transform_indices = @transform_1, window_bounds = array<i64: 1, 8, 64>}, {pipeline_mode = #tpu.pipeline_mode<synchronous>, transform_indices = @transform_2, window_bounds = array<i64: 256, 256>}, {pipeline_mode = #tpu.pipeline_mode<synchronous>, transform_indices = @transform_3, window_bounds = array<i64: 128, 64>}, {pipeline_mode = #tpu.pipeline_mode<synchronous>, transform_indices = @transform_4, window_bounds = array<i64: 64, 128>}, {transform_indices = @transform_5, window_bounds = array<i64: 1, 24, 128>}]} {
    %c0 = arith.constant 0 : index
    %c0_0 = arith.constant 0 : index
    %c0_1 = arith.constant 0 : index
    %0 = vector.load %arg2[%c0, %c0_0, %c0_1] : memref<1x24x64xf32, #tpu.memory_space<vmem>>, vector<1x24x64xf32>
    %1 = vector.shape_cast %0 : vector<1x24x64xf32> to vector<24x64xf32>
    %c0_2 = arith.constant 0 : index
    %c0_3 = arith.constant 0 : index
    %c0_4 = arith.constant 0 : index
    %2 = vector.load %arg3[%c0_2, %c0_3, %c0_4] : memref<1x8x64xf32, #tpu.memory_space<vmem>>, vector<1x8x64xf32>
    %3 = vector.shape_cast %2 : vector<1x8x64xf32> to vector<8x64xf32>
    %4 = tpu.concatenate %1, %3 in 0 : vector<24x64xf32>, vector<8x64xf32> -> vector<32x64xf32>
    %5 = vector.extract_strided_slice %4 {offsets = [0, 0], sizes = [24, 64], strides = [1, 1]} : vector<32x64xf32> to vector<24x64xf32>
    %6 = vector.extract_strided_slice %4 {offsets = [1, 0], sizes = [24, 64], strides = [1, 1]} : vector<32x64xf32> to vector<24x64xf32>
    %7 = vector.extract_strided_slice %4 {offsets = [2, 0], sizes = [24, 64], strides = [1, 1]} : vector<32x64xf32> to vector<24x64xf32>
    %8 = vector.extract_strided_slice %4 {offsets = [3, 0], sizes = [24, 64], strides = [1, 1]} : vector<32x64xf32> to vector<24x64xf32>
    %9 = tpu.concatenate %5, %6, %7, %8 in 1 : vector<24x64xf32>, vector<24x64xf32>, vector<24x64xf32>, vector<24x64xf32> -> vector<24x256xf32>
    %10 = arith.truncf %9 : vector<24x256xf32> to vector<24x256xbf16>
    %c0_5 = arith.constant 0 : index
    %c0_6 = arith.constant 0 : index
    %11 = vector.load %arg4[%c0_5, %c0_6] : memref<256x256xbf16, #tpu.memory_space<vmem>>, vector<256x256xbf16>
    %cst = arith.constant dense<0.000000e+00> : vector<24x256xf32>
    %12 = tpu.matmul %10, %11, %cst {dimension_numbers = #tpu.dot_dimension_numbers<[1], [0], [0], [1], [0, 0, 1, 1], [], []>} : vector<24x256xbf16>, vector<256x256xbf16>, vector<24x256xf32> -> vector<24x256xf32>
    %13 = vector.extract_strided_slice %12 {offsets = [0, 0], sizes = [24, 128], strides = [1, 1]} : vector<24x256xf32> to vector<24x128xf32>
    %14 = vector.extract_strided_slice %12 {offsets = [0, 128], sizes = [24, 128], strides = [1, 1]} : vector<24x256xf32> to vector<24x128xf32>
    %15 = arith.mulf %13, %13 : vector<24x128xf32>
    %16 = arith.mulf %14, %14 : vector<24x128xf32>
    %17 = arith.addf %15, %16 : vector<24x128xf32>
    %c0_7 = arith.constant 0 : index
    %c0_8 = arith.constant 0 : index
    %18 = vector.load %arg5[%c0_7, %c0_8] : memref<128x64xf32, #tpu.memory_space<vmem>>, vector<128x64xf32>
    %cst_9 = arith.constant dense<0.000000e+00> : vector<24x64xf32>
    %19 = tpu.matmul %17, %18, %cst_9 {dimension_numbers = #tpu.dot_dimension_numbers<[1], [0], [0], [1], [0, 0, 1, 1], [], []>} : vector<24x128xf32>, vector<128x64xf32>, vector<24x64xf32> -> vector<24x64xf32>
    %cst_10 = arith.constant 9.99999997E-7 : f32
    %20 = vector.broadcast %cst_10 : f32 to vector<24x64xf32>
    %21 = arith.addf %19, %20 : vector<24x64xf32>
    %22 = math.log %21 : vector<24x64xf32>
    %c0_11 = arith.constant 0 : index
    %c0_12 = arith.constant 0 : index
    %23 = vector.load %arg6[%c0_11, %c0_12] : memref<64x128xf32, #tpu.memory_space<vmem>>, vector<64x128xf32>
    %cst_13 = arith.constant dense<0.000000e+00> : vector<24x128xf32>
    %24 = tpu.matmul %22, %23, %cst_13 {dimension_numbers = #tpu.dot_dimension_numbers<[1], [0], [0], [1], [0, 0, 1, 1], [], []>} : vector<24x64xf32>, vector<64x128xf32>, vector<24x128xf32> -> vector<24x128xf32>
    %c0_14 = arith.constant 0 : index
    %c0_15 = arith.constant 0 : index
    %c0_16 = arith.constant 0 : index
    %25 = vector.load %arg7[%c0_14, %c0_15, %c0_16] : memref<1x24x128xf32, #tpu.memory_space<vmem>>, vector<1x24x128xf32>
    %26 = vector.shape_cast %25 : vector<1x24x128xf32> to vector<24x128xf32>
    %27 = vector.shape_cast %24 : vector<24x128xf32> to vector<1x24x128xf32>
    tpu.vector_store %arg7[%c0_14, %c0_15, %c0_16], %27 {strides = array<i32>} : memref<1x24x128xf32, #tpu.memory_space<vmem>>, vector<1x24x128xf32>,
    return
  }
  func.func @transform_0(%arg0: i32, %arg1: i32) -> (i32, i32, i32) {
    %c0_i32 = arith.constant 0 : i32
    %c0_i32_0 = arith.constant 0 : i32
    return %arg0, %arg1, %c0_i32 : i32, i32, i32
  }
  func.func @transform_1(%arg0: i32, %arg1: i32) -> (i32, i32, i32) {
    %c1_i32 = arith.constant 1 : i32
    %0 = arith.addi %arg1, %c1_i32 : i32
    %c3_i32 = arith.constant 3 : i32
    %1 = arith.muli %0, %c3_i32 : i32
    %c0_i32 = arith.constant 0 : i32
    %c0_i32_0 = arith.constant 0 : i32
    return %arg0, %1, %c0_i32 : i32, i32, i32
  }
  func.func @transform_2(%arg0: i32, %arg1: i32) -> (i32, i32) {
    %c0_i32 = arith.constant 0 : i32
    %c0_i32_0 = arith.constant 0 : i32
    %c0_i32_1 = arith.constant 0 : i32
    return %c0_i32, %c0_i32_0 : i32, i32
  }
  func.func @transform_3(%arg0: i32, %arg1: i32) -> (i32, i32) {
    %c0_i32 = arith.constant 0 : i32
    %c0_i32_0 = arith.constant 0 : i32
    %c0_i32_1 = arith.constant 0 : i32
    return %c0_i32, %c0_i32_0 : i32, i32
  }
  func.func @transform_4(%arg0: i32, %arg1: i32) -> (i32, i32) {
    %c0_i32 = arith.constant 0 : i32
    %c0_i32_0 = arith.constant 0 : i32
    %c0_i32_1 = arith.constant 0 : i32
    return %c0_i32, %c0_i32_0 : i32, i32
  }
  func.func @transform_5(%arg0: i32, %arg1: i32) -> (i32, i32, i32) {
    %c0_i32 = arith.constant 0 : i32
    %c0_i32_0 = arith.constant 0 : i32
    return %arg0, %arg1, %c0_i32 : i32, i32, i32
  }
}

</mosaic_0001>

<llo_original>
// kernel: mfcc.1
$region0: #{mfcc.1}
  #allocation0 [shape = 'u32[]', space=smem, size = 0x4, offset = 0x4, fixed_abs, tag = 'smem constant byte address 0x4 - core index']
  #allocation1 [shape = 'u32[72,128]{1,0:T(1,128)}', space=vmem, size = 0x9000, scoped, tag = 'internal scratch']
  %s0 = inlined_call_operand.vmem [shape: f32[2,32,64], index: 0, kind: input, shape index: {}, may-alias: {0,1}]
  %s1 = inlined_call_operand.vmem [shape: f32[2,32,64], index: 1, kind: input, shape index: {}, may-alias: {0,1}]
  %s2 = inlined_call_operand.hbm [shape: bf16[256,256], index: 2, kind: input, shape index: {}]
  %s3 = inlined_call_operand.vmem [shape: f32[128,64], index: 3, kind: input, shape index: {}]
  %s4 = inlined_call_operand.hbm [shape: f32[64,128], index: 4, kind: input, shape index: {}]
  %s5 = inlined_call_operand.vmem [shape: f32[2,24,128], index: 5, kind: output, shape index: {}]
  %s6 = sld [smem:[#allocation0]]
  $region61: #{mfcc.1} parent=0
    _
  %s8 = ssub.s32 1, %s6
  %s9 = scalar_select 0, %s8, %s6
  $region1: #{mfcc.1} parent=0
    #allocation2 [shape = 'u8[131072]{0}', space=vmem, size = 0x20000, scoped, tag = 'input window, operand 2, single buffered']
    #allocation3 [shape = 's32[2]{0}', space=sflag, size = 0x8, scoped, tag = 'scoped memory for mfcc.1']
    #allocation4 [shape = 'u8[32768]{0}', space=vmem, size = 0x8000, scoped, tag = 'input window, operand 4, single buffered']
    #allocation5 [shape = 's32[1]{0}', space=sflag, size = 0x4, scoped, tag = 'scoped memory for mfcc.1']
    %10 = vsyncpa [#allocation3], 0
    %11 = vsyncpa [#allocation5], 0
    loop: start=0, step=1, limit=4
    $region2: #{mfcc.1} parent=1 // loop_pre_header
      _
    $region3: #{mfcc.1} parent=1 // loop_header
      %s13 = sphi 0, %s17
      %p14 = scmp.ge.s32.totalorder %s13, 4
      %s20 = sphi 0, %s32
      %s21 = sphi 0, %s28
      %s22 = sphi 0, %s20
      %s23 = sphi 0, %s21
      %s24 = sphi 0, %s22
      %s25 = sphi 0, %s23
      %s37 = sphi 0, %s39
      %s40 = sphi 0, %s37
      %s41 = sphi 0, %s40
      %s57 = sphi 0, %s41
      %s69 = sphi 0, %s71
      %s72 = sphi 0, %s69
      %s73 = sphi 0, %s72
      %s89 = sphi 0, %s73
      %s93 = sphi 0, %s93
      %s95 = sphi 0, %s93
      %s96 = sphi 0, %s95
      %s110 = sphi 0, %s96
      %s114 = sphi 0, %s114
      %s116 = sphi 0, %s114
      %s117 = sphi 0, %s116
      %s131 = sphi 0, %s117
      %s135 = sphi 0, %s135
      %s137 = sphi 0, %s135
      %s138 = sphi 0, %s137
      %s152 = sphi 0, %s138
      %s160 = sphi 0, %s162
      %s163 = sphi 0, %s160
      %s164 = sphi 0, %s163
      %s180 = sphi 0, %s164
    $region4: #{mfcc.1} parent=1 // loop_header_branch
      %16 = sbr.rel (%p14) target = $region8
    $region5: #{mfcc.1} parent=1 // loop_body
      %s18 = ssub.s32 %s13, 1
      %s19 = ssub.s32 %s13, 2
      %s26 = sadd.s32 1, %s21
      %p27 = scmp.ge.s32.totalorder %s26, 1
      %s28 = scalar_select %p27, 0, %s26
      %s29 = sadd.s32 1, %s20
      %s30 = scalar_select %p27, %s29, %s20
      %p31 = scmp.ge.s32.totalorder %s30, 2
      %s32 = scalar_select %p31, 0, %s30
      %s33 = ssub.s32 %s20, %s32
      %s34 = ssub.s32 %s21, %s28
      %s35 = sor.u32 %s33, %s34
      %p36 = scmp.eq.s32.totalorder %s35, 0
      %s38 = sadd.s32 %s37, 1
      %s39 = scalar_select %p36, %s37, %s38
      %p42 = pneg %p36
      %p43 = scmp.eq.s32.totalorder %s13, 1
      %p44 = por %p42, %p43
      %p45 = scmp.ne.s32.totalorder %s37, %s40
      %p46 = scmp.eq.s32.totalorder %s13, 0
      %p47 = por %p45, %p46
      %p48 = scmp.ne.s32.totalorder %s37, %s40
      %p49 = scmp.eq.s32.totalorder %s18, 1
      %p50 = por %p48, %p49
      %p51 = scmp.ne.s32.totalorder %s40, %s41
      %p52 = scmp.eq.s32.totalorder %s18, 0
      %p53 = por %p51, %p52
      %p54 = scmp.ne.s32.totalorder %s40, %s41
      %p55 = scmp.eq.s32.totalorder %s19, 1
      %p56 = por %p54, %p55
      %p58 = scmp.ne.s32.totalorder %s41, %s57
      %p59 = scmp.eq.s32.totalorder %s19, 0
      %p60 = por %p58, %p59
      %s61 = sadd.s32 %s21, 1
      %s62 = smul.u32 %s61, 3
      %s63 = sadd.s32 %s28, 1
      %s64 = smul.u32 %s63, 3
      %s65 = ssub.s32 %s20, %s32
      %s66 = ssub.s32 %s62, %s64
      %s67 = sor.u32 %s65, %s66
      %p68 = scmp.eq.s32.totalorder %s67, 0
      %s70 = sadd.s32 %s69, 1
      %s71 = scalar_select %p68, %s69, %s70
      %p74 = pneg %p68
      %p75 = scmp.eq.s32.totalorder %s13, 1
      %p76 = por %p74, %p75
      %p77 = scmp.ne.s32.totalorder %s69, %s72
      %p78 = scmp.eq.s32.totalorder %s13, 0
      %p79 = por %p77, %p78
      %p80 = scmp.ne.s32.totalorder %s69, %s72
      %p81 = scmp.eq.s32.totalorder %s18, 1
      %p82 = por %p80, %p81
      %p83 = scmp.ne.s32.totalorder %s72, %s73
      %p84 = scmp.eq.s32.totalorder %s18, 0
      %p85 = por %p83, %p84
      %p86 = scmp.ne.s32.totalorder %s72, %s73
      %p87 = scmp.eq.s32.totalorder %s19, 1
      %p88 = por %p86, %p87
      %p90 = scmp.ne.s32.totalorder %s73, %s89
      %p91 = scmp.eq.s32.totalorder %s19, 0
      %p92 = por %p90, %p91
      %s94 = sadd.s32 %s93, 1
      %p97 = scmp.eq.s32.totalorder %s13, 1
      %p98 = scmp.ne.s32.totalorder %s93, %s95
      %p99 = scmp.eq.s32.totalorder %s13, 0
      %p100 = por %p98, %p99
      %p101 = scmp.ne.s32.totalorder %s93, %s95
      %p102 = scmp.eq.s32.totalorder %s18, 1
      %p103 = por %p101, %p102
      %p104 = scmp.ne.s32.totalorder %s95, %s96
      %p105 = scmp.eq.s32.totalorder %s18, 0
      %p106 = por %p104, %p105
      %p107 = scmp.ne.s32.totalorder %s95, %s96
      %p108 = scmp.eq.s32.totalorder %s19, 1
      %p109 = por %p107, %p108
      %p111 = scmp.ne.s32.totalorder %s96, %s110
      %p112 = scmp.eq.s32.totalorder %s19, 0
      %p113 = por %p111, %p112
      %s115 = sadd.s32 %s114, 1
      %p118 = scmp.eq.s32.totalorder %s13, 1
      %p119 = scmp.ne.s32.totalorder %s114, %s116
      %p120 = scmp.eq.s32.totalorder %s13, 0
      %p121 = por %p119, %p120
      %p122 = scmp.ne.s32.totalorder %s114, %s116
      %p123 = scmp.eq.s32.totalorder %s18, 1
      %p124 = por %p122, %p123
      %p125 = scmp.ne.s32.totalorder %s116, %s117
      %p126 = scmp.eq.s32.totalorder %s18, 0
      %p127 = por %p125, %p126
      %p128 = scmp.ne.s32.totalorder %s116, %s117
      %p129 = scmp.eq.s32.totalorder %s19, 1
      %p130 = por %p128, %p129
      %p132 = scmp.ne.s32.totalorder %s117, %s131
      %p133 = scmp.eq.s32.totalorder %s19, 0
      %p134 = por %p132, %p133
      %s136 = sadd.s32 %s135, 1
      %p139 = scmp.eq.s32.totalorder %s13, 1
      %p140 = scmp.ne.s32.totalorder %s135, %s137
      %p141 = scmp.eq.s32.totalorder %s13, 0
      %p142 = por %p140, %p141
      %p143 = scmp.ne.s32.totalorder %s135, %s137
      %p144 = scmp.eq.s32.totalorder %s18, 1
      %p145 = por %p143, %p144
      %p146 = scmp.ne.s32.totalorder %s137, %s138
      %p147 = scmp.eq.s32.totalorder %s18, 0
      %p148 = por %p146, %p147
      %p149 = scmp.ne.s32.totalorder %s137, %s138
      %p150 = scmp.eq.s32.totalorder %s19, 1
      %p151 = por %p149, %p150
      %p153 = scmp.ne.s32.totalorder %s138, %s152
      %p154 = scmp.eq.s32.totalorder %s19, 0
      %p155 = por %p153, %p154
      %s156 = ssub.s32 %s20, %s32
      %s157 = ssub.s32 %s21, %s28
      %s158 = sor.u32 %s156, %s157
      %p159 = scmp.eq.s32.totalorder %s158, 0
      %s161 = sadd.s32 %s160, 1
      %s162 = scalar_select %p159, %s160, %s161
      %p165 = pneg %p159
      %p166 = scmp.eq.s32.totalorder %s13, 1
      %p167 = por %p165, %p166
      %p168 = scmp.ne.s32.totalorder %s160, %s163
      %p169 = scmp.eq.s32.totalorder %s13, 0
      %p170 = por %p168, %p169
      %p171 = scmp.ne.s32.totalorder %s160, %s163
      %p172 = scmp.eq.s32.totalorder %s18, 1
      %p173 = por %p171, %p172
      %p174 = scmp.ne.s32.totalorder %s163, %s164
      %p175 = scmp.eq.s32.totalorder %s18, 0
      %p176 = por %p174, %p175
      %p177 = scmp.ne.s32.totalorder %s163, %s164
      %p178 = scmp.eq.s32.totalorder %s19, 1
      %p179 = por %p177, %p178
      %p181 = scmp.ne.s32.totalorder %s164, %s180
      %p182 = scmp.eq.s32.totalorder %s19, 0
      %p183 = por %p181, %p182
      %p184 = scmp.le.s32.totalorder 1, %s13
      %p185 = scmp.lt.s32.totalorder %s13, 3
      %p186 = pnand %p184, %p185
      %p187 = pneg %p186
      // Predicated region
      $region9: #{mfcc.1} parent=5 // pred_check
        _
      $region10: #{mfcc.1} parent=5 // pred_check_branch
        %189 = sbr.rel (%p186) target = $region12
      $region11: #{mfcc.1} parent=5 // pred_region
        %s190 = ssub.s32 %s13, 1
        // Predicated region
        $region13: #{mfcc.1} parent=11 // pred_check
          %p191 = pneg %p106
        $region14: #{mfcc.1} parent=11 // pred_check_branch
          %193 = sbr.rel (%p191) target = $region16
        $region15: #{mfcc.1} parent=11 // pred_region
          %195 = vsyncadd [#allocation3], 0
          %s196 = sshll.u32 %s2, 4
          %s197 = int_to_ptr.hbm [resolvable:$true] %s196
          %s198 = sshll.u32 [#allocation2], 4
          %s199 = int_to_ptr.vmem [resolvable:$true] %s198
          %204 = dma.hbm_to_vmem [thread:$0]  %s197, 4096, %s199, [#allocation3], 128, 128, 8
        $region16: #{mfcc.1} parent=11 // pred_fallthru
          _
        // Predicated region
        $region17: #{mfcc.1} parent=11 // pred_check
          %p205 = pneg %p127
        $region18: #{mfcc.1} parent=11 // pred_check_branch
          %207 = sbr.rel (%p205) target = $region20
        $region19: #{mfcc.1} parent=11 // pred_region
          _
        $region20: #{mfcc.1} parent=11 // pred_fallthru
          _
        // Predicated region
        $region21: #{mfcc.1} parent=11 // pred_check
          %p208 = pneg %p148
        $region22: #{mfcc.1} parent=11 // pred_check_branch
          %210 = sbr.rel (%p208) target = $region24
        $region23: #{mfcc.1} parent=11 // pred_region
          %212 = vsyncadd [#allocation5], 0
          %s213 = sshll.u32 %s4, 4
          %s214 = int_to_ptr.hbm [resolvable:$true] %s213
          %s215 = sshll.u32 [#allocation4], 4
          %s216 = int_to_ptr.vmem [resolvable:$true] %s215
          %221 = dma.hbm_to_vmem [thread:$0]  %s214, 1024, %s216, [#allocation5], 128, 128, 8
        $region24: #{mfcc.1} parent=11 // pred_fallthru
          _
      $region12: #{mfcc.1} parent=5 // pred_fallthru
        _
      %p222 = scmp.lt.s32.totalorder %s13, 2
      // Predicated region
      $region25: #{mfcc.1} parent=5 // pred_check
        %p223 = pneg %p222
      $region26: #{mfcc.1} parent=5 // pred_check_branch
        %225 = sbr.rel (%p223) target = $region28
      $region27: #{mfcc.1} parent=5 // pred_region
        // Predicated region
        $region29: #{mfcc.1} parent=27 // pred_check
          %p226 = pneg %p47
        $region30: #{mfcc.1} parent=27 // pred_check_branch
          %228 = sbr.rel (%p226) target = $region32
        $region31: #{mfcc.1} parent=27 // pred_region
          %s229 = smul.u32 3, %s21
          %s230 = ssub.s32 4, %s229
          %p231 = scmp.lt.s32.totalorder %s230, 3
          %s232 = scalar_select %p231, %s230, 3
          %s233 = smul.u32 8, %s232
          %p234 = scmp.lt.s32.totalorder %s20, 1
          %s235 = scalar_select %p234, %s20, 1
          %p236 = scmp.lt.s32.totalorder %s229, 3
          %s237 = scalar_select %p236, %s229, 3
          %s238 = smul.addr %s235, 4
          %s239 = sadd.s32 %s237, %s238
          %s240 = smul.addr %s239, 8
          %s241 = scalar_lea.vmem %s0, %s240
          %s242 = smul.u32 3, %s21
          %s243 = ssub.s32 4, %s242
          %p244 = scmp.lt.s32.totalorder %s243, 3
          %s245 = scalar_select %p244, %s243, 3
          %s246 = smul.u32 8, %s245
        $region32: #{mfcc.1} parent=27 // pred_fallthru
          _
        // Predicated region
        $region33: #{mfcc.1} parent=27 // pred_check
          %p247 = pneg %p79
        $region34: #{mfcc.1} parent=27 // pred_check_branch
          %249 = sbr.rel (%p247) target = $region36
        $region35: #{mfcc.1} parent=27 // pred_region
          %s250 = sadd.s32 %s21, 1
          %s251 = smul.u32 %s250, 3
          %p252 = scmp.lt.s32.totalorder %s20, 1
          %s253 = scalar_select %p252, %s20, 1
          %p254 = scmp.lt.s32.totalorder %s251, 3
          %s255 = scalar_select %p254, %s251, 3
          %s256 = smul.addr %s253, 4
          %s257 = sadd.s32 %s255, %s256
          %s258 = smul.addr %s257, 8
          %s259 = scalar_lea.vmem %s1, %s258
          %s260 = sadd.s32 %s21, 1
          %s261 = smul.u32 %s260, 3
        $region36: #{mfcc.1} parent=27 // pred_fallthru
          _
      $region28: #{mfcc.1} parent=5 // pred_fallthru
        _
      %p262 = scmp.le.s32.totalorder 1, %s13
      %p263 = scmp.lt.s32.totalorder %s13, 3
      %p264 = pnand %p262, %p263
      %p265 = pneg %p264
      // Predicated region
      $region37: #{mfcc.1} parent=5 // pred_check
        _
      $region38: #{mfcc.1} parent=5 // pred_check_branch
        %267 = sbr.rel (%p264) target = $region40
      $region39: #{mfcc.1} parent=5 // pred_region
        %s268 = ssub.s32 %s13, 1
        // Predicated region
        $region41: #{mfcc.1} parent=39 // pred_check
          %p269 = pneg %p106
        $region42: #{mfcc.1} parent=39 // pred_check_branch
          %271 = sbr.rel (%p269) target = $region44
        $region43: #{mfcc.1} parent=39 // pred_region
          %273 = dma.done [#allocation3], 4096
        $region44: #{mfcc.1} parent=39 // pred_fallthru
          _
        // Predicated region
        $region45: #{mfcc.1} parent=39 // pred_check
          %p274 = pneg %p148
        $region46: #{mfcc.1} parent=39 // pred_check_branch
          %276 = sbr.rel (%p274) target = $region48
        $region47: #{mfcc.1} parent=39 // pred_region
          %278 = dma.done [#allocation5], 1024
        $region48: #{mfcc.1} parent=39 // pred_fallthru
          _
        %s279 = smul.u32 3, %s23
        %s280 = ssub.s32 4, %s279
        %p281 = scmp.lt.s32.totalorder %s280, 3
        %s282 = scalar_select %p281, %s280, 3
        %s283 = smul.u32 8, %s282
        %p284 = scmp.lt.s32.totalorder %s22, 1
        %s285 = scalar_select %p284, %s22, 1
        %p286 = scmp.lt.s32.totalorder %s279, 3
        %s287 = scalar_select %p286, %s279, 3
        %s288 = smul.addr %s285, 4
        %s289 = sadd.s32 %s287, %s288
        %s290 = smul.addr %s289, 8
        %s291 = scalar_lea.vmem %s0, %s290
        %p292 = pneg %p53
        %p293 = pneg %p50
        %s294 = sadd.s32 %s23, 1
        %s295 = smul.u32 %s294, 3
        %p296 = scmp.lt.s32.totalorder %s22, 1
        %s297 = scalar_select %p296, %s22, 1
        %p298 = scmp.lt.s32.totalorder %s295, 3
        %s299 = scalar_select %p298, %s295, 3
        %s300 = smul.addr %s297, 4
        %s301 = sadd.s32 %s299, %s300
        %s302 = smul.addr %s301, 8
        %s303 = scalar_lea.vmem %s1, %s302
        %p304 = pneg %p85
        %p305 = pneg %p82
        %p306 = pneg %p106
        %p307 = pneg %p103
        %p308 = pneg %p127
        %p309 = pneg %p124
        %p310 = pneg %p148
        %p311 = pneg %p145
        %p312 = pneg %p176
        %p313 = pneg %p173
        %s314 = smul.u32 3, %s23
        %p315 = scmp.lt.s32.totalorder %s22, 1
        %s316 = scalar_select %p315, %s22, 1
        %p317 = scmp.lt.s32.totalorder %s314, 2
        %s318 = scalar_select %p317, %s314, 2
        %s319 = smul.addr %s316, 3
        %s320 = sadd.s32 %s318, %s319
        %s321 = smul.addr %s320, 8
        %s322 = scalar_lea.vmem %s5, %s321
        %s323 = smul.u32 3, %s23
        %s324 = ssub.s32 4, %s323
        %p325 = scmp.lt.s32.totalorder %s324, 3
        %s326 = scalar_select %p325, %s324, 3
        %s327 = smul.u32 8, %s326
        %p328 = scmp.lt.s32.totalorder %s22, 1
        %s329 = scalar_select %p328, %s22, 1
        %p330 = scmp.lt.s32.totalorder %s323, 3
        %s331 = scalar_select %p330, %s323, 3
        %s332 = smul.addr %s329, 4
        %s333 = sadd.s32 %s331, %s332
        %s334 = smul.addr %s333, 8
        %s335 = scalar_lea.vmem %s0, %s334
        %s336 = smul.u32 3, %s23
        %s337 = ssub.s32 4, %s336
        %p338 = scmp.lt.s32.totalorder %s337, 3
        %s339 = scalar_select %p338, %s337, 3
        %s340 = smul.u32 8, %s339
        %s341 = sadd.s32 %s23, 1
        %s342 = smul.u32 %s341, 3
        %p343 = scmp.lt.s32.totalorder %s22, 1
        %s344 = scalar_select %p343, %s22, 1
        %p345 = scmp.lt.s32.totalorder %s342, 3
        %s346 = scalar_select %p345, %s342, 3
        %s347 = smul.addr %s344, 4
        %s348 = sadd.s32 %s346, %s347
        %s349 = smul.addr %s348, 8
        %s350 = scalar_lea.vmem %s1, %s349
        %s351 = sadd.s32 %s23, 1
        %s352 = smul.u32 %s351, 3
        %s353 = smul.u32 3, %s23
        %p354 = scmp.lt.s32.totalorder %s22, 1
        %s355 = scalar_select %p354, %s22, 1
        %p356 = scmp.lt.s32.totalorder %s353, 2
        %s357 = scalar_select %p356, %s353, 2
        %s358 = smul.addr %s355, 3
        %s359 = sadd.s32 %s357, %s358
        %s360 = smul.addr %s359, 8
        %s361 = scalar_lea.vmem %s5, %s360
        %s362 = smul.u32 3, %s23
        %v363 = vld [vmem:[%s335] sm:$0xff]
        %v364 = vld [vmem:[%s335 + $0x8] sm:$0xff]
        %v365 = vld [vmem:[%s335 + $0x10] sm:$0xff]
        %v366 = vld [vmem:[%s350] sm:$0xff]
        %vm371 = vcmask 1046528
        %v372 = vrot.slane %v363, 1
        %v373 = vrot.slane %v364, 1
        %v374 = vsel %vm371, %v372, %v373
        %v375 = vrot.slane %v365, 1
        %v376 = vsel %vm371, %v373, %v375
        %v377 = vrot.slane %v366, 1
        %v378 = vsel %vm371, %v375, %v377
        %379 = vrot.lane.b32.xlu0 %v374, 64
        %v380 = vpop.permute.xlu0 %379
        %381 = vrot.lane.b32.xlu0 %v376, 64
        %v382 = vpop.permute.xlu0 %381
        %383 = vrot.lane.b32.xlu0 %v378, 64
        %v384 = vpop.permute.xlu0 %383
        %vm388 = vcmask 1045504
        %v389 = vrot.slane %v363, 2
        %v390 = vrot.slane %v364, 2
        %v391 = vsel %vm388, %v389, %v390
        %v392 = vrot.slane %v365, 2
        %v393 = vsel %vm388, %v390, %v392
        %v394 = vrot.slane %v366, 2
        %v395 = vsel %vm388, %v392, %v394
        %vm399 = vcmask 1044480
        %v400 = vrot.slane %v363, 3
        %v401 = vrot.slane %v364, 3
        %v402 = vsel %vm399, %v400, %v401
        %v403 = vrot.slane %v365, 3
        %v404 = vsel %vm399, %v401, %v403
        %v405 = vrot.slane %v366, 3
        %v406 = vsel %vm399, %v403, %v405
        %407 = vrot.lane.b32.xlu0 %v402, 64
        %v408 = vpop.permute.xlu0 %407
        %409 = vrot.lane.b32.xlu0 %v404, 64
        %v410 = vpop.permute.xlu0 %409
        %411 = vrot.lane.b32.xlu0 %v406, 64
        %v412 = vpop.permute.xlu0 %411
        %vm416 = vcmask 523264
        %v417 = vsel %vm416, %v363, %v380
        %v418 = vsel %vm416, %v364, %v382
        %v419 = vsel %vm416, %v365, %v384
        %v420 = vsel %vm416, %v391, %v408
        %v421 = vsel %vm416, %v393, %v410
        %v422 = vsel %vm416, %v395, %v412
        %v423 = vpack.c.bf16 %v418, %v417
        %v424 = vpack.c.bf16 %v421, %v420
        %v425 = vpack.c.bf16 %v419, %v419
        %v426 = vpack.c.bf16 %v422, %v422
        %v427 = vld [vmem:[#allocation2] sm:$0xff]
        %v428 = vld [vmem:[#allocation2 + $0x8] sm:$0xff]
        %v429 = vld [vmem:[#allocation2 + $0x10] sm:$0xff]
        %v430 = vld [vmem:[#allocation2 + $0x18] sm:$0xff]
        %v431 = vld [vmem:[#allocation2 + $0x20] sm:$0xff]
        %v432 = vld [vmem:[#allocation2 + $0x28] sm:$0xff]
        %v433 = vld [vmem:[#allocation2 + $0x30] sm:$0xff]
        %v434 = vld [vmem:[#allocation2 + $0x38] sm:$0xff]
        %v435 = vld [vmem:[#allocation2 + $0x40] sm:$0xff]
        %v436 = vld [vmem:[#allocation2 + $0x48] sm:$0xff]
        %v437 = vld [vmem:[#allocation2 + $0x50] sm:$0xff]
        %v438 = vld [vmem:[#allocation2 + $0x58] sm:$0xff]
        %v439 = vld [vmem:[#allocation2 + $0x60] sm:$0xff]
        %v440 = vld [vmem:[#allocation2 + $0x68] sm:$0xff]
        %v441 = vld [vmem:[#allocation2 + $0x70] sm:$0xff]
        %v442 = vld [vmem:[#allocation2 + $0x78] sm:$0xff]
        %v443 = vld [vmem:[#allocation2 + $0x80] sm:$0xff]
        %v444 = vld [vmem:[#allocation2 + $0x88] sm:$0xff]
        %v445 = vld [vmem:[#allocation2 + $0x90] sm:$0xff]
        %v446 = vld [vmem:[#allocation2 + $0x98] sm:$0xff]
        %v447 = vld [vmem:[#allocation2 + $0xa0] sm:$0xff]
        %v448 = vld [vmem:[#allocation2 + $0xa8] sm:$0xff]
        %v449 = vld [vmem:[#allocation2 + $0xb0] sm:$0xff]
        %v450 = vld [vmem:[#allocation2 + $0xb8] sm:$0xff]
        %v451 = vld [vmem:[#allocation2 + $0xc0] sm:$0xff]
        %v452 = vld [vmem:[#allocation2 + $0xc8] sm:$0xff]
        %v453 = vld [vmem:[#allocation2 + $0xd0] sm:$0xff]
        %v454 = vld [vmem:[#allocation2 + $0xd8] sm:$0xff]
        %v455 = vld [vmem:[#allocation2 + $0xe0] sm:$0xff]
        %v456 = vld [vmem:[#allocation2 + $0xe8] sm:$0xff]
        %v457 = vld [vmem:[#allocation2 + $0xf0] sm:$0xff]
        %v458 = vld [vmem:[#allocation2 + $0xf8] sm:$0xff]
        %v491 = vunpack.c.l.b16 %v427
        %v492 = vunpack.c.h.b16 %v427
        %v493 = vunpack.c.l.b16 %v428
        %v494 = vunpack.c.h.b16 %v428
        %v495 = vunpack.c.l.b16 %v429
        %v496 = vunpack.c.h.b16 %v429
        %v497 = vunpack.c.l.b16 %v430
        %v498 = vunpack.c.h.b16 %v430
        %v499 = vunpack.c.l.b16 %v431
        %v500 = vunpack.c.h.b16 %v431
        %v501 = vunpack.c.l.b16 %v432
        %v502 = vunpack.c.h.b16 %v432
        %v503 = vunpack.c.l.b16 %v433
        %v504 = vunpack.c.h.b16 %v433
        %v505 = vunpack.c.l.b16 %v434
        %v506 = vunpack.c.h.b16 %v434
        %v507 = vunpack.c.l.b16 %v435
        %v508 = vunpack.c.h.b16 %v435
        %v509 = vunpack.c.l.b16 %v436
        %v510 = vunpack.c.h.b16 %v436
        %v511 = vunpack.c.l.b16 %v437
        %v512 = vunpack.c.h.b16 %v437
        %v513 = vunpack.c.l.b16 %v438
        %v514 = vunpack.c.h.b16 %v438
        %v515 = vunpack.c.l.b16 %v439
        %v516 = vunpack.c.h.b16 %v439
        %v517 = vunpack.c.l.b16 %v440
        %v518 = vunpack.c.h.b16 %v440
        %v519 = vunpack.c.l.b16 %v441
        %v520 = vunpack.c.h.b16 %v441
        %v521 = vunpack.c.l.b16 %v442
        %v522 = vunpack.c.h.b16 %v442
        %v523 = vunpack.c.l.b16 %v443
        %v524 = vunpack.c.h.b16 %v443
        %v525 = vunpack.c.l.b16 %v444
        %v526 = vunpack.c.h.b16 %v444
        %v527 = vunpack.c.l.b16 %v445
        %v528 = vunpack.c.h.b16 %v445
        %v529 = vunpack.c.l.b16 %v446
        %v530 = vunpack.c.h.b16 %v446
        %v531 = vunpack.c.l.b16 %v447
        %v532 = vunpack.c.h.b16 %v447
        %v533 = vunpack.c.l.b16 %v448
        %v534 = vunpack.c.h.b16 %v448
        %v535 = vunpack.c.l.b16 %v449
        %v536 = vunpack.c.h.b16 %v449
        %v537 = vunpack.c.l.b16 %v450
        %v538 = vunpack.c.h.b16 %v450
        %v539 = vunpack.c.l.b16 %v451
        %v540 = vunpack.c.h.b16 %v451
        %v541 = vunpack.c.l.b16 %v452
        %v542 = vunpack.c.h.b16 %v452
        %v543 = vunpack.c.l.b16 %v453
        %v544 = vunpack.c.h.b16 %v453
        %v545 = vunpack.c.l.b16 %v454
        %v546 = vunpack.c.h.b16 %v454
        %v547 = vunpack.c.l.b16 %v455
        %v548 = vunpack.c.h.b16 %v455
        %v549 = vunpack.c.l.b16 %v456
        %v550 = vunpack.c.h.b16 %v456
        %v551 = vunpack.c.l.b16 %v457
        %v552 = vunpack.c.h.b16 %v457
        %v553 = vunpack.c.l.b16 %v458
        %v554 = vunpack.c.h.b16 %v458
        %v555 = vpack.c.b16 %v493, %v491
        %v556 = vpack.c.b16 %v494, %v492
        %v557 = vpack.c.b16 %v497, %v495
        %v558 = vpack.c.b16 %v498, %v496
        %v559 = vpack.c.b16 %v501, %v499
        %v560 = vpack.c.b16 %v502, %v500
        %v561 = vpack.c.b16 %v505, %v503
        %v562 = vpack.c.b16 %v506, %v504
        %v563 = vpack.c.b16 %v509, %v507
        %v564 = vpack.c.b16 %v510, %v508
        %v565 = vpack.c.b16 %v513, %v511
        %v566 = vpack.c.b16 %v514, %v512
        %v567 = vpack.c.b16 %v517, %v515
        %v568 = vpack.c.b16 %v518, %v516
        %v569 = vpack.c.b16 %v521, %v519
        %v570 = vpack.c.b16 %v522, %v520
        %v571 = vpack.c.b16 %v525, %v523
        %v572 = vpack.c.b16 %v526, %v524
        %v573 = vpack.c.b16 %v529, %v527
        %v574 = vpack.c.b16 %v530, %v528
        %v575 = vpack.c.b16 %v533, %v531
        %v576 = vpack.c.b16 %v534, %v532
        %v577 = vpack.c.b16 %v537, %v535
        %v578 = vpack.c.b16 %v538, %v536
        %v579 = vpack.c.b16 %v541, %v539
        %v580 = vpack.c.b16 %v542, %v540
        %v581 = vpack.c.b16 %v545, %v543
        %v582 = vpack.c.b16 %v546, %v544
        %v583 = vpack.c.b16 %v549, %v547
        %v584 = vpack.c.b16 %v550, %v548
        %v585 = vpack.c.b16 %v553, %v551
        %v586 = vpack.c.b16 %v554, %v552
        %619 = vmatpush.bf16.msra.mxu0 %v569
        %620 = vmatpush.bf16.msra.mxu0 %v567
        %621 = vmatpush.bf16.msra.mxu0 %v565
        %622 = vmatpush.bf16.msra.mxu0 %v563
        %623 = vmatpush.bf16.msra.mxu0 %v561
        %624 = vmatpush.bf16.msra.mxu0 %v559
        %625 = vmatpush.bf16.msra.mxu0 %v557
        %626 = vmatpush.bf16.msra.mxu0 %v555
        %627 = vmatmul.bf16.gmra.mxu0 %v423
        %v628 = vpop.f32.mrf.mxu0
        %v629 = vadd.f32 0.0, %v628
        %v630 = vpop.f32.mrf.mxu0
        %v631 = vadd.f32 0.0, %v630
        %632 = vmatmul.bf16.gmra.mxu0 %v425
        %v633 = vpop.f32.mrf.mxu0
        %v634 = vadd.f32 0.0, %v633
        %v635 = vpop.f32.mrf.mxu0
        %636 = vdwg.mxu0
        %637 = vmatpush.bf16.msra.mxu0 %v585
        %638 = vmatpush.bf16.msra.mxu0 %v583
        %639 = vmatpush.bf16.msra.mxu0 %v581
        %640 = vmatpush.bf16.msra.mxu0 %v579
        %641 = vmatpush.bf16.msra.mxu0 %v577
        %642 = vmatpush.bf16.msra.mxu0 %v575
        %643 = vmatpush.bf16.msra.mxu0 %v573
        %644 = vmatpush.bf16.msra.mxu0 %v571
        %645 = vmatmul.bf16.gmra.mxu0 %v424
        %v646 = vpop.f32.mrf.mxu0
        %v647 = vadd.f32 %v629, %v646
        %v648 = vpop.f32.mrf.mxu0
        %v649 = vadd.f32 %v631, %v648
        %650 = vmatmul.bf16.gmra.mxu0 %v426
        %v651 = vpop.f32.mrf.mxu0
        %v652 = vadd.f32 %v634, %v651
        %v653 = vpop.f32.mrf.mxu0
        %654 = vdwg.mxu0
        %655 = vmatpush.bf16.msra.mxu0 %v570
        %656 = vmatpush.bf16.msra.mxu0 %v568
        %657 = vmatpush.bf16.msra.mxu0 %v566
        %658 = vmatpush.bf16.msra.mxu0 %v564
        %659 = vmatpush.bf16.msra.mxu0 %v562
        %660 = vmatpush.bf16.msra.mxu0 %v560
        %661 = vmatpush.bf16.msra.mxu0 %v558
        %662 = vmatpush.bf16.msra.mxu0 %v556
        %663 = vmatmul.bf16.gmra.mxu0 %v423
        %v664 = vpop.f32.mrf.mxu0
        %v665 = vadd.f32 0.0, %v664
        %v666 = vpop.f32.mrf.mxu0
        %v667 = vadd.f32 0.0, %v666
        %668 = vmatmul.bf16.gmra.mxu0 %v425
        %v669 = vpop.f32.mrf.mxu0
        %v670 = vadd.f32 0.0, %v669
        %v671 = vpop.f32.mrf.mxu0
        %672 = vdwg.mxu0
        %673 = vmatpush.bf16.msra.mxu0 %v586
        %674 = vmatpush.bf16.msra.mxu0 %v584
        %675 = vmatpush.bf16.msra.mxu0 %v582
        %676 = vmatpush.bf16.msra.mxu0 %v580
        %677 = vmatpush.bf16.msra.mxu0 %v578
        %678 = vmatpush.bf16.msra.mxu0 %v576
        %679 = vmatpush.bf16.msra.mxu0 %v574
        %680 = vmatpush.bf16.msra.mxu0 %v572
        %681 = vmatmul.bf16.gmra.mxu0 %v424
        %v682 = vpop.f32.mrf.mxu0
        %v683 = vadd.f32 %v665, %v682
        %v684 = vpop.f32.mrf.mxu0
        %v685 = vadd.f32 %v667, %v684
        %686 = vmatmul.bf16.gmra.mxu0 %v426
        %v687 = vpop.f32.mrf.mxu0
        %v688 = vadd.f32 %v670, %v687
        %v689 = vpop.f32.mrf.mxu0
        %690 = vdwg.mxu0
        %v691 = vmul.f32 %v647, %v647
        %v692 = vmul.f32 %v649, %v649
        %v693 = vmul.f32 %v652, %v652
        %v694 = vmul.f32 %v683, %v683
        %v695 = vmul.f32 %v685, %v685
        %v696 = vmul.f32 %v688, %v688
        %v697 = vadd.f32 %v691, %v694
        %v698 = vadd.f32 %v692, %v695
        %v699 = vadd.f32 %v693, %v696
        %v700 = vld [vmem:[%s3] sm:$0xff]
        %v701 = vld [vmem:[%s3 + $0x8] sm:$0xff]
        %v702 = vld [vmem:[%s3 + $0x10] sm:$0xff]
        %v703 = vld [vmem:[%s3 + $0x18] sm:$0xff]
        %v704 = vld [vmem:[%s3 + $0x20] sm:$0xff]
        %v705 = vld [vmem:[%s3 + $0x28] sm:$0xff]
        %v706 = vld [vmem:[%s3 + $0x30] sm:$0xff]
        %v707 = vld [vmem:[%s3 + $0x38] sm:$0xff]
        %v708 = vld [vmem:[%s3 + $0x40] sm:$0xff]
        %v709 = vld [vmem:[%s3 + $0x48] sm:$0xff]
        %v710 = vld [vmem:[%s3 + $0x50] sm:$0xff]
        %v711 = vld [vmem:[%s3 + $0x58] sm:$0xff]
        %v712 = vld [vmem:[%s3 + $0x60] sm:$0xff]
        %v713 = vld [vmem:[%s3 + $0x68] sm:$0xff]
        %v714 = vld [vmem:[%s3 + $0x70] sm:$0xff]
        %v715 = vld [vmem:[%s3 + $0x78] sm:$0xff]
        %716 = vmatpush.msra.mxu0 %v715
        %717 = vmatpush.msra.mxu0 %v714
        %718 = vmatpush.msra.mxu0 %v713
        %719 = vmatpush.msra.mxu0 %v712
        %720 = vmatpush.msra.mxu0 %v711
        %721 = vmatpush.msra.mxu0 %v710
        %722 = vmatpush.msra.mxu0 %v709
        %723 = vmatpush.msra.mxu0 %v708
        %724 = vmatpush.msra.mxu0 %v707
        %725 = vmatpush.msra.mxu0 %v706
        %726 = vmatpush.msra.mxu0 %v705
        %727 = vmatpush.msra.mxu0 %v704
        %728 = vmatpush.msra.mxu0 %v703
        %729 = vmatpush.msra.mxu0 %v702
        %730 = vmatpush.msra.mxu0 %v701
        %731 = vmatpush.msra.mxu0 %v700
        %732 = vmatmul.f32.gmra.mxu0 %v697
        %v733 = vpop.f32.mrf.mxu0
        %v734 = vadd.f32 1e-06, %v733
        %735 = vmatmul.f32.gmra.mxu0 %v698
        %v736 = vpop.f32.mrf.mxu0
        %v737 = vadd.f32 1e-06, %v736
        %738 = vmatmul.f32.gmra.mxu0 %v699
        %v739 = vpop.f32.mrf.mxu0
        %v740 = vadd.f32 1e-06, %v739
        %741 = vdwg.mxu0
        %v742 = vlog2.pop %v734
        %v743 = vmul.f32 %v742, 0.6931472
        %v744 = vlog2.pop %v737
        %v745 = vmul.f32 %v744, 0.6931472
        %v746 = vlog2.pop %v740
        %v747 = vmul.f32 %v746, 0.6931472
        %v748 = vld [vmem:[#allocation4] sm:$0xff]
        %v749 = vld [vmem:[#allocation4 + $0x8] sm:$0xff]
        %v750 = vld [vmem:[#allocation4 + $0x10] sm:$0xff]
        %v751 = vld [vmem:[#allocation4 + $0x18] sm:$0xff]
        %v752 = vld [vmem:[#allocation4 + $0x20] sm:$0xff]
        %v753 = vld [vmem:[#allocation4 + $0x28] sm:$0xff]
        %v754 = vld [vmem:[#allocation4 + $0x30] sm:$0xff]
        %v755 = vld [vmem:[#allocation4 + $0x38] sm:$0xff]
        %v757 = vsel %vm416, %v743, 0
        %v760 = vsel %vm416, %v745, 0
        %v763 = vsel %vm416, %v747, 0
        %765 = vmatpush.msra.mxu0 0.0
        %766 = vmatpush.msra.mxu0 0.0
        %767 = vmatpush.msra.mxu0 0.0
        %768 = vmatpush.msra.mxu0 0.0
        %769 = vmatpush.msra.mxu0 0.0
        %770 = vmatpush.msra.mxu0 0.0
        %771 = vmatpush.msra.mxu0 0.0
        %772 = vmatpush.msra.mxu0 0.0
        %773 = vmatpush.msra.mxu0 %v755
        %774 = vmatpush.msra.mxu0 %v754
        %775 = vmatpush.msra.mxu0 %v753
        %776 = vmatpush.msra.mxu0 %v752
        %777 = vmatpush.msra.mxu0 %v751
        %778 = vmatpush.msra.mxu0 %v750
        %779 = vmatpush.msra.mxu0 %v749
        %780 = vmatpush.msra.mxu0 %v748
        %781 = vmatmul.f32.gmra.mxu0 %v757
        %v782 = vpop.f32.mrf.mxu0
        %v783 = vadd.f32 0.0, %v782
        %784 = vmatmul.f32.gmra.mxu0 %v760
        %v785 = vpop.f32.mrf.mxu0
        %v786 = vadd.f32 0.0, %v785
        %787 = vmatmul.f32.gmra.mxu0 %v763
        %v788 = vpop.f32.mrf.mxu0
        %v789 = vadd.f32 0.0, %v788
        %790 = vdwg.mxu0
        %791 = vst [vmem:[%s361] sm:$0xff] %v783
        %792 = vst [vmem:[%s361 + $0x8] sm:$0xff] %v786
        %793 = vst [vmem:[%s361 + $0x10] sm:$0xff] %v789
        %s794 = smul.u32 3, %s23
        %p795 = scmp.lt.s32.totalorder %s22, 1
        %s796 = scalar_select %p795, %s22, 1
        %p797 = scmp.lt.s32.totalorder %s794, 2
        %s798 = scalar_select %p797, %s794, 2
        %s799 = smul.addr %s796, 3
        %s800 = sadd.s32 %s798, %s799
        %s801 = smul.addr %s800, 8
        %s802 = scalar_lea.vmem %s5, %s801
        // Predicated region
        $region49: #{mfcc.1} parent=39 // pred_check
          %p803 = pneg %p173
        $region50: #{mfcc.1} parent=39 // pred_check_branch
          %805 = sbr.rel (%p803) target = $region52
        $region51: #{mfcc.1} parent=39 // pred_region
          %s806 = smul.u32 3, %s23
        $region52: #{mfcc.1} parent=39 // pred_fallthru
          _
      $region40: #{mfcc.1} parent=5 // pred_fallthru
        _
      %p807 = scmp.le.s32.totalorder 2, %s13
      // Predicated region
      $region53: #{mfcc.1} parent=5 // pred_check
        %p808 = pneg %p807
      $region54: #{mfcc.1} parent=5 // pred_check_branch
        %810 = sbr.rel (%p808) target = $region56
      $region55: #{mfcc.1} parent=5 // pred_region
        %s811 = ssub.s32 %s13, 2
        // Predicated region
        $region57: #{mfcc.1} parent=55 // pred_check
          %p812 = pneg %p179
        $region58: #{mfcc.1} parent=55 // pred_check_branch
          %814 = sbr.rel (%p812) target = $region60
        $region59: #{mfcc.1} parent=55 // pred_region
          %s815 = smul.u32 3, %s25
          %p816 = scmp.lt.s32.totalorder %s24, 1
          %s817 = scalar_select %p816, %s24, 1
          %p818 = scmp.lt.s32.totalorder %s815, 2
          %s819 = scalar_select %p818, %s815, 2
          %s820 = smul.addr %s817, 3
          %s821 = sadd.s32 %s819, %s820
          %s822 = smul.addr %s821, 8
          %s823 = scalar_lea.vmem %s5, %s822
        $region60: #{mfcc.1} parent=55 // pred_fallthru
          _
      $region56: #{mfcc.1} parent=5 // pred_fallthru
        _
    $region6: #{mfcc.1} parent=1 // loop_footer
      %s17 = sadd.s32 1, %s13
    $region7: #{mfcc.1} parent=1 // loop_footer_branch
      %12 = sbr.rel target = $region3
    $region8: #{mfcc.1} parent=1 // loop_exit
      _
    %824 = vsyncpa [#allocation3], 1
    %s825 = scalar_lea.sflag [#allocation3], 1
    %826 = vsyncpa %s825, 1
    %827 = vsyncpa [#allocation5], 1

</llo_original>
